<compile_context>
chip_gen: v7x
topology: tpu7x:2x2x1
jax: 0.10.0
libtpu: 0.0.40
codegen_flags: <defaults>
</compile_context>

<pallas_src>
import jax
import jax.numpy as jnp
from jax.experimental import pallas as pl
from jax.experimental.pallas import tpu as pltpu

_LANE = 128


def _drop_path_kernel(scale_ref, x_ref, o_ref):
    # scale_ref: (TB, 1) float32 per-sample scale (mask / keep_prob).
    # x_ref / o_ref: (TB, TF) lane-dense tiles in x.dtype.
    o_ref[...] = (x_ref[...].astype(jnp.float32) * scale_ref[...]).astype(o_ref.dtype)


def _round_up(n, m):
    return ((n + m - 1) // m) * m


def _target_block_bytes():
    """Per-block byte budget tuned per TPU generation."""
    try:
        kind = jax.devices()[0].device_kind.lower()
    except Exception:
        kind = ""
    if "v5 lite" in kind or "v5e" in kind or "v5litepod" in kind:
        # v5e: 16 MiB scoped-VMEM default; 2 MiB blocks (8 MiB double-buffered)
        # are already <5% per-step overhead at ~0.8 TB/s.
        return 2 << 20
    if "v6" in kind or "v7" in kind:
        # v6e/v7x: 6 MiB blocks -> ~24 MiB double-buffered (in + out), inside
        # the 32 MiB scoped default and v7x's 64 MiB physical VMEM.
        return 6 << 20
    return 4 << 20


def drop_path(x, drop_prob: float = 0.0, training: bool = False, *, key=None,
              donate: bool = False):
    """Pallas implementation of drop_path (per-sample stochastic depth).

    Set donate=True only when the caller actually donates x (e.g. jit with
    donate_argnums); otherwise the alias would force a defensive copy of x.
    """
    if drop_prob == 0.0 or not training:
        return x
    assert key is not None, "need a PRNG key in training mode"

    keep_prob = 1.0 - drop_prob
    B = x.shape[0]
    F = 1
    for d in x.shape[1:]:
        F *= d

    # Per-sample keep mask (O(B), plain JAX): floor(keep_prob + U[0,1)) in {0,1}.
    # Keep the folded scale in f32; the kernel multiplies in f32 and casts once,
    # matching the PyTorch x.div(keep_prob) * mask rounding behavior.
    u = jax.random.uniform(key, (B,), dtype=jnp.float32)
    scale = jnp.floor(jnp.float32(keep_prob) + u) * jnp.float32(1.0 / keep_prob)
    scale = scale.reshape(B, 1)

    # Lane-dense 2-D view (no data movement for a contiguous x).
    x_flat = x.reshape(B, F)

    # ---- tile sizing -------------------------------------------------------
    itemsize = jnp.dtype(x.dtype).itemsize
    pack = max(8, 32 // itemsize)          # sublane pack: f32=8, bf16=16, int8=32
    target = _target_block_bytes()

    # Feature axis is the primary (contiguous) growth axis, multiple of 128.
    tf_cap = max(_LANE, (target // (pack * itemsize)) // _LANE * _LANE)
    TF = min(_round_up(F, _LANE), tf_cap)

    # Grow the batch tile only when TF alone can't reach the byte target
    # (small C*H*W); keep it a multiple of the dtype's sublane packing.
    tb_cap = max(pack, (target // (TF * itemsize)) // pack * pack)
    TB = min(_round_up(B, pack), tb_cap)

    grid_b = pl.cdiv(B, TB)
    grid_f = pl.cdiv(F, TF)

    # Megacore balance (v7x: 2 TensorCores/chip): when the batch grid collapses
    # to one tile and the tensor is non-trivial, give the feature grid >=2
    # (even) tiles so both cores pull HBM.
    if grid_b == 1 and B * F * itemsize >= (512 << 10):
        want = grid_f if grid_f >= 2 else 2
        if want % 2 == 1:
            want += 1
        if want != grid_f:
            TF = max(_LANE, _round_up(pl.cdiv(F, want), _LANE))
            grid_f = pl.cdiv(F, TF)

    grid = (grid_b, grid_f)

    out_flat = pl.pallas_call(
        _drop_path_kernel,
        out_shape=jax.ShapeDtypeStruct((B, F), x.dtype),
        grid=grid,
        in_specs=[
            pl.BlockSpec((TB, 1), lambda i, j: (i, 0)),    # per-sample scale
            pl.BlockSpec((TB, TF), lambda i, j: (i, j)),   # x tile
        ],
        out_specs=pl.BlockSpec((TB, TF), lambda i, j: (i, j)),
        input_output_aliases=({1: 0} if donate else {}),
        compiler_params=pltpu.CompilerParams(
            dimension_semantics=("parallel", "parallel")),
        cost_estimate=pl.CostEstimate(
            flops=B * F,
            transcendentals=0,
            bytes_accessed=2 * B * F * itemsize + B * 4),
    )(scale, x_flat)

    return out_flat.reshape(x.shape)


class DropPath:
    """Mirror of the PyTorch nn.Module (no learnable parameters)."""

    def __init__(self, drop_prob=None):
        self.drop_prob = drop_prob
        self.training = True

    def __call__(self, x, key):
        return drop_path(x, self.drop_prob or 0.0, self.training, key=key)


if __name__ == "__main__":
    root = jax.random.PRNGKey(0)
    k_x, k_drop, k_x2, k_drop2, k_x3, k_drop3 = jax.random.split(root, 6)

    drop_prob = 0.2
    keep_prob = 1.0 - drop_prob

    # Case 1: small NCHW input consistent with the module's conv-backbone use.
    B, C, H, W = 2, 4, 16, 16
    x = jax.random.normal(k_x, (B, C, H, W), dtype=jnp.float32)
    module = DropPath(drop_prob)
    out = jax.block_until_ready(module(x, k_drop))

    u_ref = jax.random.uniform(k_drop, (B,), dtype=jnp.float32)
    mask_ref = jnp.floor(keep_prob + u_ref).reshape(B, 1, 1, 1)
    ref = x / keep_prob * mask_ref
    assert out.shape == x.shape and out.dtype == x.dtype
    assert jnp.allclose(out, ref, atol=1e-6, rtol=1e-6)

    # Case 2: odd shape (F not a multiple of 128) — exercises the ragged-edge
    # (masked) last feature block with no padding.
    x2 = jax.random.normal(k_x2, (3, 5, 7, 9), dtype=jnp.float32)
    out2 = jax.block_until_ready(drop_path(x2, drop_prob, True, key=k_drop2))
    u2 = jax.random.uniform(k_drop2, (3,), dtype=jnp.float32)
    mask2 = jnp.floor(keep_prob + u2).reshape(3, 1, 1, 1)
    ref2 = x2 / keep_prob * mask2
    assert out2.shape == x2.shape
    assert jnp.allclose(out2, ref2, atol=1e-6, rtol=1e-6)

    # Case 3: bf16 activations — exercises the f32-compute / bf16-store path
    # and the bf16 sublane-packed TB.
    x3 = jax.random.normal(k_x3, (4, 8, 16, 16), dtype=jnp.bfloat16)
    out3 = jax.block_until_ready(drop_path(x3, drop_prob, True, key=k_drop3))
    u3 = jax.random.uniform(k_drop3, (4,), dtype=jnp.float32)
    mask3 = jnp.floor(keep_prob + u3).reshape(4, 1, 1, 1)
    ref3 = (x3.astype(jnp.float32) / keep_prob * mask3).astype(jnp.bfloat16)
    assert out3.shape == x3.shape and out3.dtype == x3.dtype
    assert jnp.allclose(out3.astype(jnp.float32), ref3.astype(jnp.float32),
                        atol=1e-2, rtol=1e-2)

    # Eval / drop_prob=0 path is the identity.
    module.training = False
    assert jnp.array_equal(module(x, k_drop), x)

    print("KERNEL_OK")
</pallas_src>

<mosaic_0001>
module attributes {stable_mosaic.version = 11 : i64} {
  func.func @_drop_path_kernel(%arg0: i32, %arg1: i32, %arg2: memref<8x1xf32, #tpu.memory_space<vmem>>, %arg3: memref<8x1024xf32, #tpu.memory_space<vmem>>, %arg4: memref<8x1024xf32, #tpu.memory_space<vmem>>) attributes {dimension_semantics = [#tpu.dimension_semantics<parallel>, #tpu.dimension_semantics<parallel>], iteration_bounds = array<i64: 1, 1>, scalar_prefetch = 0 : i64, scratch_operands = 0 : i64, tpu.core_type = #tpu.core_type<tc>, window_params = [{transform_indices = @transform_0, window_bounds = array<i64: 8, 1>}, {transform_indices = @transform_1, window_bounds = array<i64: 8, 1024>}, {transform_indices = @transform_2, window_bounds = array<i64: 8, 1024>}]} {
    %c0 = arith.constant 0 : index
    %c0_0 = arith.constant 0 : index
    %0 = vector.load %arg3[%c0, %c0_0] : memref<8x1024xf32, #tpu.memory_space<vmem>>, vector<8x1024xf32>
    %c0_1 = arith.constant 0 : index
    %c0_2 = arith.constant 0 : index
    %1 = vector.load %arg2[%c0_1, %c0_2] : memref<8x1xf32, #tpu.memory_space<vmem>>, vector<8x1xf32>
    %2 = vector.broadcast %1 : vector<8x1xf32> to vector<8x1024xf32>
    %3 = arith.mulf %0, %2 : vector<8x1024xf32>
    %c0_3 = arith.constant 0 : index
    %c0_4 = arith.constant 0 : index
    %4 = vector.load %arg4[%c0_3, %c0_4] : memref<8x1024xf32, #tpu.memory_space<vmem>>, vector<8x1024xf32>
    tpu.vector_store %arg4[%c0_3, %c0_4], %3 {strides = array<i32>} : memref<8x1024xf32, #tpu.memory_space<vmem>>, vector<8x1024xf32>,
    return
  }
  func.func @transform_0(%arg0: i32, %arg1: i32) -> (i32, i32) {
    %c0_i32 = arith.constant 0 : i32
    %c0_i32_0 = arith.constant 0 : i32
    return %arg0, %c0_i32 : i32, i32
  }
  func.func @transform_1(%arg0: i32, %arg1: i32) -> (i32, i32) {
    %c0_i32 = arith.constant 0 : i32
    return %arg0, %arg1 : i32, i32
  }
  func.func @transform_2(%arg0: i32, %arg1: i32) -> (i32, i32) {
    %c0_i32 = arith.constant 0 : i32
    return %arg0, %arg1 : i32, i32
  }
}

</mosaic_0001>

<llo_original>
// kernel: tpu_custom_call.1
$region0: #{tpu_custom_call.1}
  #allocation0 [shape = 'u32[]', space=smem, size = 0x4, offset = 0x4, fixed_abs, tag = 'smem constant byte address 0x4 - core index']
  #allocation1 [shape = 'u32[144,128]{1,0:T(1,128)}', space=vmem, size = 0x12000, scoped, tag = 'internal scratch']
  %s0 = inlined_call_operand.vmem [shape: f32[2,1], index: 0, kind: input, shape index: {}]
  %s1 = inlined_call_operand.hbm [shape: f32[2,1024], index: 1, kind: input, shape index: {}]
  %s2 = inlined_call_operand.hbm [shape: f32[2,1024], index: 2, kind: output, shape index: {}]
  %s3 = sld [smem:[#allocation0]]
  $region22: #{tpu_custom_call.1} parent=0
    _
  %s5 = ssub.s32 1, %s3
  %s6 = scalar_select 0, %s5, %s3
  $region1: #{tpu_custom_call.1} parent=0
    #allocation2 [shape = 'u8[32768]{0}', space=vmem, size = 0x8000, scoped, tag = 'input window, operand 1, single buffered']
    #allocation3 [shape = 's32[1]{0}', space=sflag, size = 0x4, scoped, tag = 'scoped memory for tpu_custom_call.1']
    #allocation4 [shape = 's32[1]{0}', space=sflag, size = 0x4, scoped, tag = 'scoped memory for tpu_custom_call.1']
    #allocation5 [shape = 'u8[32768]{0}', space=vmem, size = 0x8000, scoped, tag = 'output window, operand 0, single buffered']
    %7 = vsyncpa [#allocation3], 0
    %8 = vsyncpa [#allocation4], 0
    // Predicated region
    $region2: #{tpu_custom_call.1} parent=1 // pred_check
      _
    $region3: #{tpu_custom_call.1} parent=1 // pred_check_branch
      %10 = sbr.rel (0) target = $region5
    $region4: #{tpu_custom_call.1} parent=1 // pred_region
      _
    $region5: #{tpu_custom_call.1} parent=1 // pred_fallthru
      _
    // Predicated region
    $region6: #{tpu_custom_call.1} parent=1 // pred_check
      _
    $region7: #{tpu_custom_call.1} parent=1 // pred_check_branch
      %12 = sbr.rel (0) target = $region9
    $region8: #{tpu_custom_call.1} parent=1 // pred_region
      %s14 = ssub.s32 1024, 256
      %15 = vsyncadd [#allocation3], %s14
      %s16 = sshll.u32 [#allocation2], 4
      %s17 = int_to_ptr.vmem [resolvable:$true] %s16
      %22 = dma.hbm_to_vmem [thread:$0]  %s1, 256, %s17, [#allocation3], 256, 256, 16
    $region9: #{tpu_custom_call.1} parent=1 // pred_fallthru
      _
    // Predicated region
    $region10: #{tpu_custom_call.1} parent=1 // pred_check
      _
    $region11: #{tpu_custom_call.1} parent=1 // pred_check_branch
      %24 = sbr.rel (0) target = $region13
    $region12: #{tpu_custom_call.1} parent=1 // pred_region
      %25 = dma.done [#allocation3], 1024
    $region13: #{tpu_custom_call.1} parent=1 // pred_fallthru
      _
    %v26 = vld [vmem:[#allocation2] sm:$0xff]
    %v27 = vld [vmem:[#allocation2 + $0x8] sm:$0xff]
    %v28 = vld [vmem:[#allocation2 + $0x10] sm:$0xff]
    %v29 = vld [vmem:[#allocation2 + $0x18] sm:$0xff]
    %v30 = vld [vmem:[#allocation2 + $0x20] sm:$0xff]
    %v31 = vld [vmem:[#allocation2 + $0x28] sm:$0xff]
    %v32 = vld [vmem:[#allocation2 + $0x30] sm:$0xff]
    %v33 = vld [vmem:[#allocation2 + $0x38] sm:$0xff]
    %v34 = vld [vmem:[%s0] sm:$0xff]
    %36 = vset.pattern.permute.xlu0 0
    %37 = vperm.xlu0 %36, %v34
    %v38 = vpop.permute.xlu0 %37
    %v40 = vunpack.c.l.s4 269488144
    %v41 = vunpack.c.0.s8 %v40
    %v42 = vlaneseq
    %v43 = vshrl.u32 %v42, 7
    %v44 = vsub.s32 %v41, %v43
    %v45 = vrot.slane %v38, %v44
    %v47 = vunpack.c.l.s4 842150450
    %v48 = vunpack.c.0.s8 %v47
    %v49 = vlaneseq
    %v50 = vshrl.u32 %v49, 7
    %v51 = vsub.s32 %v48, %v50
    %v52 = vrot.slane %v38, %v51
    %v54 = vunpack.c.l.s4 1414812756
    %v55 = vunpack.c.0.s8 %v54
    %v56 = vlaneseq
    %v57 = vshrl.u32 %v56, 7
    %v58 = vsub.s32 %v55, %v57
    %v59 = vrot.slane %v38, %v58
    %v61 = vunpack.c.l.s4 1987475062
    %v62 = vunpack.c.0.s8 %v61
    %v63 = vlaneseq
    %v64 = vshrl.u32 %v63, 7
    %v65 = vsub.s32 %v62, %v64
    %v66 = vrot.slane %v38, %v65
    %v71 = vmul.f32 %v26, %v45
    %v72 = vmul.f32 %v27, %v45
    %v73 = vmul.f32 %v28, %v52
    %v74 = vmul.f32 %v29, %v52
    %v75 = vmul.f32 %v30, %v59
    %v76 = vmul.f32 %v31, %v59
    %v77 = vmul.f32 %v32, %v66
    %v78 = vmul.f32 %v33, %v66
    %79 = vst [vmem:[#allocation5] sm:$0xff] %v71
    %80 = vst [vmem:[#allocation5 + $0x8] sm:$0xff] %v72
    %81 = vst [vmem:[#allocation5 + $0x10] sm:$0xff] %v73
    %82 = vst [vmem:[#allocation5 + $0x18] sm:$0xff] %v74
    %83 = vst [vmem:[#allocation5 + $0x20] sm:$0xff] %v75
    %84 = vst [vmem:[#allocation5 + $0x28] sm:$0xff] %v76
    %85 = vst [vmem:[#allocation5 + $0x30] sm:$0xff] %v77
    %86 = vst [vmem:[#allocation5 + $0x38] sm:$0xff] %v78
    // Predicated region
    $region14: #{tpu_custom_call.1} parent=1 // pred_check
      _
    $region15: #{tpu_custom_call.1} parent=1 // pred_check_branch
      %88 = sbr.rel (0) target = $region17
    $region16: #{tpu_custom_call.1} parent=1 // pred_region
      %s90 = ssub.s32 1024, 256
      %91 = vsyncadd [#allocation4], %s90
      %s92 = sshll.u32 [#allocation5], 4
      %s93 = int_to_ptr.vmem [resolvable:$true] %s92
      %98 = dma.vmem_to_hbm [thread:$0]  %s93, 256, %s2, [#allocation4], 256, 256, 16
    $region17: #{tpu_custom_call.1} parent=1 // pred_fallthru
      _
    // Predicated region
    $region18: #{tpu_custom_call.1} parent=1 // pred_check
      _
    $region19: #{tpu_custom_call.1} parent=1 // pred_check_branch
      %100 = sbr.rel (0) target = $region21
    $region20: #{tpu_custom_call.1} parent=1 // pred_region
      %101 = dma.done [#allocation4], 1024
    $region21: #{tpu_custom_call.1} parent=1 // pred_fallthru
      _
    %102 = vsyncpa [#allocation3], 1
    %103 = vsyncpa [#allocation4], 1

</llo_original>
